<compile_context>
chip_gen: v5e
topology: v5e:2x2
jax: 0.10.0
libtpu: 0.0.40
codegen_flags: <defaults>
</compile_context>

<pallas_src>
import functools

import jax
import jax.numpy as jnp
import numpy as np
from jax.experimental import pallas as pl
from jax.experimental.pallas import tpu as pltpu

_EPS = 1e-5  # PyTorch InstanceNorm2d default


def _round_up(x, m):
    return (x + m - 1) // m * m


# ----------------------------------------------------------------------------
# pltpu.roll direction probe (one tiny kernel, cached).  Makes the tap-shift
# construction robust to the rotate-direction convention of the backend.
# ----------------------------------------------------------------------------
def _probe_kernel(x_ref, o_ref):
    o_ref[...] = pltpu.roll(x_ref[...], shift=1, axis=1)


@functools.lru_cache(maxsize=None)
def _roll_matches_jnp_roll():
    """True iff pltpu.roll(x, s, axis)[..., k] == x[..., k - s]  (jnp.roll semantics)."""
    row = np.tile(np.arange(128, dtype=np.float32), (8, 1))
    out = pl.pallas_call(
        _probe_kernel,
        out_shape=jax.ShapeDtypeStruct((8, 128), jnp.float32),
    )(jnp.asarray(row))
    return bool(np.asarray(out)[0, 0] == 127.0)


# ----------------------------------------------------------------------------
# Kernel body factory: conv(3x3) + InstanceNorm(affine) [+ ReLU] [+ residual]
# for one sample, on a reflection-padded flat slab (C_pad, Lp).
# ----------------------------------------------------------------------------
def _make_conv_in_kernel(*, C, C_pad, H, W, apply_relu, add_residual,
                         compute_dtype, roll_like_jnp):
    Wp = W + 2
    Lp = (H + 2) * (W + 2)
    inv_n = 1.0 / float(H * W)
    tap_offsets = [di * Wp + dj for di in range(3) for dj in range(3)]

    def shift_left(x, t):
        # result[:, k] == x[:, (k + t) % Lp]
        t = t % Lp
        if t == 0:
            return x
        s = (Lp - t) % Lp if roll_like_jnp else t
        return pltpu.roll(x, shift=s, axis=1)

    def body(xp_ref, w_ref, g_ref, b_ref, *rest):
        if add_residual:
            res_ref, o_ref, stk_ref = rest
        else:
            o_ref, stk_ref = rest

        xp = xp_ref[...]                                       # (C_pad, Lp) f32

        # Pack the 9 shifted taps into a (9*C_pad, Lp) VMEM scratch at
        # sublane-aligned row offsets, then run ONE MXU matmul with K = 9*C_pad.
        for t_idx, off in enumerate(tap_offsets):
            stk_ref[t_idx * C_pad:(t_idx + 1) * C_pad, :] = shift_left(xp, off)
        stacked = stk_ref[...].astype(compute_dtype)           # bf16 MXU operands

        acc = jnp.dot(w_ref[...], stacked,
                      preferred_element_type=jnp.float32)      # (C, Lp) f32
        # NOTE: the conv bias is intentionally omitted — a per-channel constant
        # is exactly cancelled by the InstanceNorm mean subtraction.

        # Instance norm over valid (non-pad) columns, single pass (sum / sumsq).
        col = jax.lax.broadcasted_iota(jnp.int32, (1, Lp), 1)
        valid = jnp.logical_and(col % Wp < W, col < H * Wp)
        acc_v = jnp.where(valid, acc, 0.0)
        s1 = jnp.sum(acc_v, axis=1, keepdims=True)             # (C, 1)
        s2 = jnp.sum(acc_v * acc_v, axis=1, keepdims=True)     # (C, 1)
        mean = s1 * inv_n
        var = jnp.maximum(s2 * inv_n - mean * mean, 0.0)
        scale = g_ref[...] * jax.lax.rsqrt(var + _EPS)         # gamma folded in
        shift = b_ref[...] - mean * scale                      # beta folded in
        y = acc * scale + shift
        if apply_relu:
            y = jnp.maximum(y, 0.0)
        if add_residual:
            # Residual source = padded original input slab (f32, exact); roll it
            # into the output frame (interior starts at padded offset (1, 1)).
            res = shift_left(res_ref[...][:C, :], Wp + 1)
            y = y + res
        o_ref[...] = y

    return body


def _vmem_limit_bytes(C, C_pad, Lp, has_residual):
    need = (
        2 * C_pad * Lp * 4                      # input slab, double-buffered
        + (2 * C_pad * Lp * 4 if has_residual else 0)
        + 2 * C * Lp * 4                        # output, double-buffered
        + 9 * C_pad * Lp * 4                    # f32 tap scratch
        + 9 * C_pad * Lp * 2                    # bf16 copy feeding the MXU
        + 6 * C * Lp * 4                        # acc + IN temporaries
        + 4 * C * 9 * C_pad                     # packed weights
    )
    need = need * 5 // 4 + (2 << 20)            # headroom
    return int(min(max(need, 32 * 1024 * 1024), 96 * 1024 * 1024))


# ----------------------------------------------------------------------------
# ConvBlock wrapper: one pallas_call over grid=(N,)
# ----------------------------------------------------------------------------
def _conv_block_pallas(xp, w_packed, gamma, beta, *, C, H, W, apply_relu,
                       residual_src, compute_dtype, roll_like_jnp):
    N, C_pad, Lp = xp.shape
    Hp, Wp = H + 2, W + 2
    assert Lp == Hp * Wp

    g2 = gamma.reshape(C, 1).astype(jnp.float32)
    b2 = beta.reshape(C, 1).astype(jnp.float32)

    in_specs = [
        pl.BlockSpec((pl.Squeezed(), C_pad, Lp), lambda n: (n, 0, 0)),   # padded slab
        pl.BlockSpec((C, 9 * C_pad), lambda n: (0, 0)),                  # packed weights
        pl.BlockSpec((C, 1), lambda n: (0, 0)),                          # gamma
        pl.BlockSpec((C, 1), lambda n: (0, 0)),                          # beta
    ]
    args = [xp, w_packed, g2, b2]
    if residual_src is not None:
        in_specs.append(pl.BlockSpec((pl.Squeezed(), C_pad, Lp), lambda n: (n, 0, 0)))
        args.append(residual_src)

    kernel = _make_conv_in_kernel(
        C=C, C_pad=C_pad, H=H, W=W, apply_relu=apply_relu,
        add_residual=residual_src is not None,
        compute_dtype=compute_dtype, roll_like_jnp=roll_like_jnp)

    out = pl.pallas_call(
        kernel,
        out_shape=jax.ShapeDtypeStruct((N, C, Lp), jnp.float32),
        grid_spec=pltpu.PrefetchScalarGridSpec(
            num_scalar_prefetch=0,
            grid=(N,),
            in_specs=in_specs,
            out_specs=pl.BlockSpec((pl.Squeezed(), C, Lp), lambda n: (n, 0, 0)),
            scratch_shapes=[pltpu.VMEM((9 * C_pad, Lp), jnp.float32)],
        ),
        compiler_params=pltpu.CompilerParams(
            dimension_semantics=("parallel",),
            vmem_limit_bytes=_vmem_limit_bytes(C, C_pad, Lp,
                                               residual_src is not None),
        ),
    )(*args)
    return out


# ----------------------------------------------------------------------------
# Glue (pure indexing, done in XLA): reflection pad + channel pad + flatten
# ----------------------------------------------------------------------------
def _pad_reflect_slab(x, C_pad):
    """(N, C, H, W) -> (N, C_pad, (H+2)*(W+2)) f32 reflection-padded slab."""
    N, C, H, W = x.shape
    xp = jnp.pad(x, ((0, 0), (0, 0), (1, 1), (1, 1)), mode="reflect")
    if C_pad > C:
        xp = jnp.pad(xp, ((0, 0), (0, C_pad - C), (0, 0), (0, 0)))
    return xp.reshape(N, C_pad, (H + 2) * (W + 2)).astype(jnp.float32)


def _pack_weights(w, C_pad, compute_dtype):
    """(C_out, C_in, 3, 3) -> (C_out, 9*C_pad); column (di*3+dj)*C_pad + ci."""
    C_out, C_in = w.shape[:2]
    if C_pad > C_in:
        w = jnp.pad(w, ((0, 0), (0, C_pad - C_in), (0, 0), (0, 0)))
    return jnp.transpose(w, (0, 2, 3, 1)).reshape(C_out, 9 * C_pad).astype(compute_dtype)


@functools.partial(jax.jit, static_argnames=("compute_dtype", "roll_like_jnp"))
def _residual_block_impl(x, params, *, compute_dtype, roll_like_jnp):
    (w1, b1, g1, be1), (w2, b2, g2, be2) = params
    del b1, b2  # conv bias is cancelled exactly by the InstanceNorm mean subtraction
    N, C, H, W = x.shape
    Hp, Wp = H + 2, W + 2
    C_pad = max(_round_up(C, 8), 8)

    x = x.astype(jnp.float32)
    xp1 = _pad_reflect_slab(x, C_pad)
    w1p = _pack_weights(w1, C_pad, compute_dtype)
    w2p = _pack_weights(w2, C_pad, compute_dtype)

    # ConvBlock 1: conv + IN + ReLU
    y1_pf = _conv_block_pallas(xp1, w1p, g1, be1, C=C, H=H, W=W, apply_relu=True,
                               residual_src=None, compute_dtype=compute_dtype,
                               roll_like_jnp=roll_like_jnp)
    y1 = y1_pf.reshape(N, C, Hp, Wp)[:, :, :H, :W]

    # ConvBlock 2: conv + IN (+ residual add of x, fused in-kernel)
    xp2 = _pad_reflect_slab(y1, C_pad)
    y2_pf = _conv_block_pallas(xp2, w2p, g2, be2, C=C, H=H, W=W, apply_relu=False,
                               residual_src=xp1, compute_dtype=compute_dtype,
                               roll_like_jnp=roll_like_jnp)
    return y2_pf.reshape(N, C, Hp, Wp)[:, :, :H, :W]


def residual_block_forward(x, params, compute_dtype=jnp.bfloat16):
    # The roll-direction probe must run outside any trace; it is cached.
    return _residual_block_impl(x, params, compute_dtype=compute_dtype,
                                roll_like_jnp=_roll_matches_jnp_roll())


# ----------------------------------------------------------------------------
# Pure-JAX reference (for correctness checks)
# ----------------------------------------------------------------------------
def _ref_conv_block(x, w, b, gamma, beta, relu, compute_dtype):
    xp = jnp.pad(x, ((0, 0), (0, 0), (1, 1), (1, 1)), mode="reflect")
    y = jax.lax.conv_general_dilated(
        xp.astype(compute_dtype), w.astype(compute_dtype),
        window_strides=(1, 1), padding="VALID",
        dimension_numbers=("NCHW", "OIHW", "NCHW"),
        preferred_element_type=jnp.float32)
    y = y + b.reshape(1, -1, 1, 1)
    m = y.mean(axis=(2, 3), keepdims=True)
    v = ((y - m) ** 2).mean(axis=(2, 3), keepdims=True)
    y = (y - m) * jax.lax.rsqrt(v + _EPS)
    y = y * gamma.reshape(1, -1, 1, 1) + beta.reshape(1, -1, 1, 1)
    if relu:
        y = jnp.maximum(y, 0.0)
    return y


def _ref_residual_block(x, params, compute_dtype):
    (w1, b1, g1, be1), (w2, b2, g2, be2) = params
    y = _ref_conv_block(x, w1, b1, g1, be1, relu=True, compute_dtype=compute_dtype)
    y = _ref_conv_block(y, w2, b2, g2, be2, relu=False, compute_dtype=compute_dtype)
    return y + x


# ----------------------------------------------------------------------------
if __name__ == "__main__":
    N, C, H, W = 2, 4, 16, 16

    key = jax.random.PRNGKey(0)
    keys = jax.random.split(key, 3)
    x = jax.random.normal(keys[0], (N, C, H, W), dtype=jnp.float32)

    def make_convblock_params(k):
        k1, k2, k3, k4 = jax.random.split(k, 4)
        w = 0.1 * jax.random.normal(k1, (C, C, 3, 3), dtype=jnp.float32)
        b = 0.1 * jax.random.normal(k2, (C,), dtype=jnp.float32)
        gamma = 1.0 + 0.1 * jax.random.normal(k3, (C,), dtype=jnp.float32)
        beta = 0.1 * jax.random.normal(k4, (C,), dtype=jnp.float32)
        return (w, b, gamma, beta)

    params = (make_convblock_params(keys[1]), make_convblock_params(keys[2]))

    # f32 MXU path: tight check against the pure-JAX reference.
    out_f32 = jax.block_until_ready(
        residual_block_forward(x, params, compute_dtype=jnp.float32))
    ref_f32 = _ref_residual_block(x, params, compute_dtype=jnp.float32)
    np.testing.assert_allclose(np.asarray(out_f32), np.asarray(ref_f32),
                               rtol=5e-4, atol=5e-4)

    # Default bf16-operand MXU path (f32 accumulate / norm / residual): compare
    # against a reference that also feeds bf16 operands to the convolutions.
    out = jax.block_until_ready(residual_block_forward(x, params))
    ref = _ref_residual_block(x, params, compute_dtype=jnp.bfloat16)
    np.testing.assert_allclose(np.asarray(out), np.asarray(ref),
                               rtol=5e-2, atol=5e-2)

    print("KERNEL_OK")
</pallas_src>

<mosaic_0001>
module attributes {stable_mosaic.version = 11 : i64} {
  func.func @_probe_kernel(%arg0: memref<8x128xf32, #tpu.memory_space<vmem>>, %arg1: memref<8x128xf32, #tpu.memory_space<vmem>>) attributes {dimension_semantics = [], scalar_prefetch = 0 : i64, scratch_operands = 0 : i64, tpu.core_type = #tpu.core_type<tc>} {
    %c0 = arith.constant 0 : index
    %c0_0 = arith.constant 0 : index
    %0 = vector.load %arg0[%c0, %c0_0] : memref<8x128xf32, #tpu.memory_space<vmem>>, vector<8x128xf32>
    %c1_i32 = arith.constant 1 : i32
    %1 = tpu.dynamic_rotate %0 by %c1_i32 dim 1 : vector<8x128xf32>, i32 -> vector<8x128xf32>
    %c0_1 = arith.constant 0 : index
    %c0_2 = arith.constant 0 : index
    %2 = vector.load %arg1[%c0_1, %c0_2] : memref<8x128xf32, #tpu.memory_space<vmem>>, vector<8x128xf32>
    tpu.vector_store %arg1[%c0_1, %c0_2], %1 {strides = array<i32>} : memref<8x128xf32, #tpu.memory_space<vmem>>, vector<8x128xf32>,
    return
  }
}

</mosaic_0001>

<llo_original>
// kernel: tpu_custom_call.1
$region0: #{tpu_custom_call.1}
  #allocation0 [shape = 'u32[]', space=smem, size = 0x4, offset = 0x4, fixed_abs, tag = 'smem constant byte address 0x4 - core index']
  #allocation1 [shape = 'u32[72,128]{1,0:T(1,128)}', space=vmem, size = 0x9000, scoped, tag = 'internal scratch']
  %s0 = inlined_call_operand.hbm [shape: f32[8,128], index: 0, kind: input, shape index: {}]
  %s1 = inlined_call_operand.hbm [shape: f32[8,128], index: 1, kind: output, shape index: {}]
  %s2 = sld [smem:[#allocation0]]
  $region18: #{tpu_custom_call.1} parent=0
    _
  %s4 = ssub.s32 1, %s2
  %s5 = scalar_select 0, %s4, %s2
  $region1: #{tpu_custom_call.1} parent=0
    #allocation2 [shape = 'u8[4096]{0}', space=vmem, size = 0x1000, scoped, tag = 'input window, operand 0, single buffered']
    #allocation3 [shape = 's32[1]{0}', space=sflag, size = 0x4, scoped, tag = 'scoped memory for tpu_custom_call.1']
    #allocation4 [shape = 's32[1]{0}', space=sflag, size = 0x4, scoped, tag = 'scoped memory for tpu_custom_call.1']
    #allocation5 [shape = 'u8[4096]{0}', space=vmem, size = 0x1000, scoped, tag = 'output window, operand 0, single buffered']
    %6 = vsyncpa [#allocation3], 0
    %7 = vsyncpa [#allocation4], 0
    // Predicated region
    $region2: #{tpu_custom_call.1} parent=1 // pred_check
      _
    $region3: #{tpu_custom_call.1} parent=1 // pred_check_branch
      %9 = sbr.rel (0) target = $region5
    $region4: #{tpu_custom_call.1} parent=1 // pred_region
      %11 = vsyncadd [#allocation3], 0
      %s13 = sshll.u32 %s0, 4
      %s14 = int_to_ptr.hbm [resolvable:$true] %s13
      %s15 = sshll.u32 [#allocation2], 4
      %s16 = int_to_ptr.vmem [resolvable:$true] %s15
      %18 = dma.hbm_to_vmem [thread:$0]  %s14, 128, %s16, [#allocation3]
    $region5: #{tpu_custom_call.1} parent=1 // pred_fallthru
      _
    // Predicated region
    $region6: #{tpu_custom_call.1} parent=1 // pred_check
      _
    $region7: #{tpu_custom_call.1} parent=1 // pred_check_branch
      %20 = sbr.rel (0) target = $region9
    $region8: #{tpu_custom_call.1} parent=1 // pred_region
      %22 = dma.done [#allocation3], 128
    $region9: #{tpu_custom_call.1} parent=1 // pred_fallthru
      _
    %v23 = vld [vmem:[#allocation2] sm:$0xff]
    %24 = vrot.lane.b32.xlu0 %v23, 1
    %v25 = vpop.permute.xlu0 %24
    %26 = vst [vmem:[#allocation5] sm:$0xff] %v25
    // Predicated region
    $region10: #{tpu_custom_call.1} parent=1 // pred_check
      _
    $region11: #{tpu_custom_call.1} parent=1 // pred_check_branch
      %28 = sbr.rel (0) target = $region13
    $region12: #{tpu_custom_call.1} parent=1 // pred_region
      %30 = vsyncadd [#allocation4], 0
      %s32 = sshll.u32 [#allocation5], 4
      %s33 = int_to_ptr.vmem [resolvable:$true] %s32
      %s34 = sshll.u32 %s1, 4
      %s35 = int_to_ptr.hbm [resolvable:$true] %s34
      %37 = dma.vmem_to_hbm [thread:$0]  %s33, 128, %s35, [#allocation4]
    $region13: #{tpu_custom_call.1} parent=1 // pred_fallthru
      _
    // Predicated region
    $region14: #{tpu_custom_call.1} parent=1 // pred_check
      _
    $region15: #{tpu_custom_call.1} parent=1 // pred_check_branch
      %39 = sbr.rel (0) target = $region17
    $region16: #{tpu_custom_call.1} parent=1 // pred_region
      %41 = dma.done [#allocation4], 128
    $region17: #{tpu_custom_call.1} parent=1 // pred_fallthru
      _
    %42 = vsyncpa [#allocation3], 1
    %43 = vsyncpa [#allocation4], 1

</llo_original>
